<compile_context>
chip_gen: v7x
topology: tpu7x:2x2x1
jax: 0.10.0
libtpu: 0.0.40
codegen_flags: <defaults>
</compile_context>

<pallas_src>
import jax
import jax.numpy as jnp
import numpy as np
from jax.experimental import pallas as pl
from jax.experimental.pallas import tpu as pltpu


def _round_up(x: int, m: int) -> int:
    return (x + m - 1) // m * m


def _drop_path_kernel(scale_ref, x_ref, o_ref):
    # scale_ref: (TR, 1) per-row scale (0 or 1/keep_prob) in the input dtype.
    # x_ref/o_ref: (TR, L) tiles.  Pure mem-bound elementwise multiply; the
    # (TR, 1) operand broadcasts across the lane axis on the VPU.
    o_ref[...] = x_ref[...] * scale_ref[...]


def drop_path(x: jax.Array, drop_prob: float = 0.1, training: bool = True,
              key: jax.Array | None = None) -> jax.Array:
    """Pallas implementation of timm-style drop_path (per-sample stochastic depth)."""
    if drop_prob == 0.0 or not training:
        return x
    keep_prob = 1.0 - drop_prob
    if key is None:
        key = jax.random.PRNGKey(0)

    n = x.shape[0]
    f = int(np.prod(x.shape[1:])) if x.ndim > 1 else 1

    # --- per-sample mask, generated once (tiny: N scalars) ---------------------
    # floor(keep_prob + U[0,1)) in {0,1}  ==  Bernoulli(keep_prob), matching timm.
    u = jax.random.uniform(key, (n,), dtype=jnp.float32)
    mask = jnp.floor(keep_prob + u)
    scale = (mask * (1.0 / keep_prob)).astype(x.dtype)          # (N,)

    # --- layout: (N, F) -> (N*R, L), L a large multiple of 128 -----------------
    if f % 128 == 0:
        lanes = next(l for l in (2048, 1024, 512, 256, 128) if f % l == 0)
        f_pad = f
    else:
        # TODO(synk): for F not a multiple of 128 this pads + slices (two extra
        # HBM passes); an edge-masked last-dim block would avoid the copies.
        lanes = min(512, _round_up(f, 128))
        f_pad = _round_up(f, lanes)
    rows_per_sample = f_pad // lanes
    total_rows = n * rows_per_sample

    x2 = x.reshape(n, f)
    if f_pad != f:
        x2 = jnp.pad(x2, ((0, 0), (0, f_pad - f)))
    x2 = x2.reshape(total_rows, lanes)

    # Per-row scale: every row of sample b gets scale[b].  (total_rows, 1) is
    # tiny compared to the tensor itself.
    scale_rows = jnp.repeat(scale, rows_per_sample).reshape(total_rows, 1)

    # Row-tile size from a VMEM byte budget: ~2 MiB per x tile keeps the
    # double-buffered in+out working set (~8 MiB) well under the default
    # scoped-VMEM limit on all of v5e/v6e/v7x while staying near the HBM
    # roofline (512-row / 2 MiB tiles already sit at ~85% of peak BW).
    itemsize = jnp.dtype(x.dtype).itemsize
    target_tile_bytes = 2 * 1024 * 1024
    rows_budget = max(8, (target_tile_bytes // (lanes * itemsize)) // 8 * 8)
    tr = total_rows if total_rows <= rows_budget else rows_budget
    grid = (pl.cdiv(total_rows, tr),)

    out = pl.pallas_call(
        _drop_path_kernel,
        out_shape=jax.ShapeDtypeStruct((total_rows, lanes), x.dtype),
        grid=grid,
        in_specs=[
            pl.BlockSpec((tr, 1), lambda i: (i, 0)),        # per-row scale
            pl.BlockSpec((tr, lanes), lambda i: (i, 0)),    # x tile
        ],
        out_specs=pl.BlockSpec((tr, lanes), lambda i: (i, 0)),
        compiler_params=pltpu.CompilerParams(
            dimension_semantics=("parallel",)),             # megacore on v7x
    )(scale_rows, x2)

    out = out.reshape(n, f_pad)
    if f_pad != f:
        out = out[:, :f]
    return out.reshape(x.shape)


class DropPath:
    """Mirror of the PyTorch module. drop_prob defaults to 0.1."""

    def __init__(self, drop_prob: float = 0.1):
        self.drop_prob = drop_prob
        self.training = True

    def __call__(self, x: jax.Array, key: jax.Array | None = None) -> jax.Array:
        return drop_path(x, self.drop_prob, self.training, key=key)


if __name__ == "__main__":
    key = jax.random.PRNGKey(0)
    # NCHW-style input consistent with the module's typical usage.
    x = jax.random.normal(key, (2, 4, 16, 16), dtype=jnp.float32)

    module = DropPath(drop_prob=0.1)

    # Training mode: per-sample stochastic depth with rescaling by 1/keep_prob.
    y_train = module(x, key=jax.random.PRNGKey(1234))
    y_train = jax.block_until_ready(y_train)

    # Sanity: each sample must be either all zeros or x / keep_prob.
    keep_prob = 1.0 - module.drop_prob
    yn = np.asarray(y_train)
    xn = np.asarray(x)
    for b in range(xn.shape[0]):
        is_zero = np.allclose(yn[b], 0.0)
        is_scaled = np.allclose(yn[b], xn[b] / keep_prob, rtol=1e-5, atol=1e-5)
        assert is_zero or is_scaled, f"sample {b}: unexpected drop_path output"

    # Eval mode (or drop_prob == 0): identity.
    module.training = False
    y_eval = jax.block_until_ready(module(x))
    assert np.allclose(np.asarray(y_eval), xn)

    print("KERNEL_OK")
</pallas_src>

<mosaic_0001>
module attributes {stable_mosaic.version = 11 : i64} {
  func.func @_drop_path_kernel(%arg0: i32, %arg1: memref<2x1xf32, #tpu.memory_space<vmem>>, %arg2: memref<2x1024xf32, #tpu.memory_space<vmem>>, %arg3: memref<2x1024xf32, #tpu.memory_space<vmem>>) attributes {dimension_semantics = [#tpu.dimension_semantics<parallel>], iteration_bounds = array<i64: 1>, scalar_prefetch = 0 : i64, scratch_operands = 0 : i64, tpu.core_type = #tpu.core_type<tc>, window_params = [{transform_indices = @transform_0, window_bounds = array<i64: 2, 1>}, {transform_indices = @transform_1, window_bounds = array<i64: 2, 1024>}, {transform_indices = @transform_2, window_bounds = array<i64: 2, 1024>}]} {
    %c0 = arith.constant 0 : index
    %c0_0 = arith.constant 0 : index
    %0 = vector.load %arg2[%c0, %c0_0] : memref<2x1024xf32, #tpu.memory_space<vmem>>, vector<2x1024xf32>
    %c0_1 = arith.constant 0 : index
    %c0_2 = arith.constant 0 : index
    %1 = vector.load %arg1[%c0_1, %c0_2] : memref<2x1xf32, #tpu.memory_space<vmem>>, vector<2x1xf32>
    %2 = vector.broadcast %1 : vector<2x1xf32> to vector<2x1024xf32>
    %3 = arith.mulf %0, %2 : vector<2x1024xf32>
    %c0_3 = arith.constant 0 : index
    %c0_4 = arith.constant 0 : index
    %4 = vector.load %arg3[%c0_3, %c0_4] : memref<2x1024xf32, #tpu.memory_space<vmem>>, vector<2x1024xf32>
    tpu.vector_store %arg3[%c0_3, %c0_4], %3 {strides = array<i32>} : memref<2x1024xf32, #tpu.memory_space<vmem>>, vector<2x1024xf32>,
    return
  }
  func.func @transform_0(%arg0: i32) -> (i32, i32) {
    %c0_i32 = arith.constant 0 : i32
    %c0_i32_0 = arith.constant 0 : i32
    return %arg0, %c0_i32 : i32, i32
  }
  func.func @transform_1(%arg0: i32) -> (i32, i32) {
    %c0_i32 = arith.constant 0 : i32
    %c0_i32_0 = arith.constant 0 : i32
    return %arg0, %c0_i32 : i32, i32
  }
  func.func @transform_2(%arg0: i32) -> (i32, i32) {
    %c0_i32 = arith.constant 0 : i32
    %c0_i32_0 = arith.constant 0 : i32
    return %arg0, %c0_i32 : i32, i32
  }
}

</mosaic_0001>

<llo_original>
// kernel: tpu_custom_call.1
$region0: #{tpu_custom_call.1}
  #allocation0 [shape = 'u32[]', space=smem, size = 0x4, offset = 0x4, fixed_abs, tag = 'smem constant byte address 0x4 - core index']
  #allocation1 [shape = 'u32[144,128]{1,0:T(1,128)}', space=vmem, size = 0x12000, scoped, tag = 'internal scratch']
  %s0 = inlined_call_operand.vmem [shape: f32[2,1], index: 0, kind: input, shape index: {}]
  %s1 = inlined_call_operand.hbm [shape: f32[2,1024], index: 1, kind: input, shape index: {}]
  %s2 = inlined_call_operand.hbm [shape: f32[2,1024], index: 2, kind: output, shape index: {}]
  %s3 = sld [smem:[#allocation0]]
  $region22: #{tpu_custom_call.1} parent=0
    _
  %s5 = ssub.s32 1, %s3
  %s6 = scalar_select 0, %s5, %s3
  $region1: #{tpu_custom_call.1} parent=0
    #allocation2 [shape = 'u8[8192]{0}', space=vmem, size = 0x2000, scoped, tag = 'input window, operand 1, single buffered']
    #allocation3 [shape = 's32[1]{0}', space=sflag, size = 0x4, scoped, tag = 'scoped memory for tpu_custom_call.1']
    #allocation4 [shape = 's32[1]{0}', space=sflag, size = 0x4, scoped, tag = 'scoped memory for tpu_custom_call.1']
    #allocation5 [shape = 'u8[8192]{0}', space=vmem, size = 0x2000, scoped, tag = 'output window, operand 0, single buffered']
    %7 = vsyncpa [#allocation3], 0
    %8 = vsyncpa [#allocation4], 0
    // Predicated region
    $region2: #{tpu_custom_call.1} parent=1 // pred_check
      _
    $region3: #{tpu_custom_call.1} parent=1 // pred_check_branch
      %10 = sbr.rel (0) target = $region5
    $region4: #{tpu_custom_call.1} parent=1 // pred_region
      _
    $region5: #{tpu_custom_call.1} parent=1 // pred_fallthru
      _
    // Predicated region
    $region6: #{tpu_custom_call.1} parent=1 // pred_check
      _
    $region7: #{tpu_custom_call.1} parent=1 // pred_check_branch
      %12 = sbr.rel (0) target = $region9
    $region8: #{tpu_custom_call.1} parent=1 // pred_region
      %s14 = ssub.s32 256, 256
      %15 = vsyncadd [#allocation3], %s14
      %s17 = sshll.u32 [#allocation2], 4
      %s18 = int_to_ptr.vmem [resolvable:$true] %s17
      %20 = dma.hbm_to_vmem [thread:$0]  %s1, 256, %s18, [#allocation3]
    $region9: #{tpu_custom_call.1} parent=1 // pred_fallthru
      _
    // Predicated region
    $region10: #{tpu_custom_call.1} parent=1 // pred_check
      _
    $region11: #{tpu_custom_call.1} parent=1 // pred_check_branch
      %22 = sbr.rel (0) target = $region13
    $region12: #{tpu_custom_call.1} parent=1 // pred_region
      %23 = dma.done [#allocation3], 256
    $region13: #{tpu_custom_call.1} parent=1 // pred_fallthru
      _
    %v24 = vld [vmem:[#allocation2] sm:$0xff]
    %v25 = vld [vmem:[#allocation2 + $0x8] sm:$0xff]
    %v26 = vld [vmem:[%s0] sm:$0x3]
    %28 = vset.pattern.permute.xlu0 0
    %29 = vperm.xlu0 %28, %v26
    %v30 = vpop.permute.xlu0 %29
    %v32 = vunpack.c.l.s4 269488144
    %v33 = vunpack.c.0.s8 %v32
    %v34 = vlaneseq
    %v35 = vshrl.u32 %v34, 7
    %v36 = vsub.s32 %v33, %v35
    %v37 = vrot.slane %v30, %v36
    %v39 = vmul.f32 %v24, %v37
    %v40 = vmul.f32 %v25, %v37
    %41 = vst [vmem:[#allocation5] sm:$0xff] %v39
    %42 = vst [vmem:[#allocation5 + $0x8] sm:$0xff] %v40
    // Predicated region
    $region14: #{tpu_custom_call.1} parent=1 // pred_check
      _
    $region15: #{tpu_custom_call.1} parent=1 // pred_check_branch
      %44 = sbr.rel (0) target = $region17
    $region16: #{tpu_custom_call.1} parent=1 // pred_region
      %s46 = ssub.s32 256, 256
      %47 = vsyncadd [#allocation4], %s46
      %s49 = sshll.u32 [#allocation5], 4
      %s50 = int_to_ptr.vmem [resolvable:$true] %s49
      %52 = dma.vmem_to_hbm [thread:$0]  %s50, 256, %s2, [#allocation4]
    $region17: #{tpu_custom_call.1} parent=1 // pred_fallthru
      _
    // Predicated region
    $region18: #{tpu_custom_call.1} parent=1 // pred_check
      _
    $region19: #{tpu_custom_call.1} parent=1 // pred_check_branch
      %54 = sbr.rel (0) target = $region21
    $region20: #{tpu_custom_call.1} parent=1 // pred_region
      %55 = dma.done [#allocation4], 256
    $region21: #{tpu_custom_call.1} parent=1 // pred_fallthru
      _
    %56 = vsyncpa [#allocation3], 1
    %57 = vsyncpa [#allocation4], 1

</llo_original>
